<compile_context>
chip_gen: v7x
topology: tpu7x:2x2x1
jax: 0.10.0
libtpu: 0.0.40
codegen_flags: <defaults>
</compile_context>

<pallas_src>
import jax
import jax.numpy as jnp
from jax import lax
from jax.experimental import pallas as pl
from jax.experimental.pallas import tpu as pltpu

# ---------------- logical model dimensions (small, synthetic) ----------------
B = 2      # batch
S = 8      # sequence length
H = 32     # hidden size
F = 64     # FFN inner size
V = 64     # vocab size

# ---------------- padded (lane-dense) dimensions ----------------
HP = 128           # hidden padded to one full lane width
VP = 128           # vocab padded to one full lane width (one-hot gather matmul)
BS = B * S         # flattened token axis
NW = 6             # [wq | wk | wv | wo | w1 | w2] packed along columns

LN_EPS = 1e-12     # matches BERT-family HF configs (torch.nn.LayerNorm default is 1e-5)
NEG_INF = -1e9


# -----------------------------------------------------------------------------
# Fused kernel: embedding lookup + encoder layer + masked mean pooling + L2 norm.
# Single invocation, whole arrays resident in VMEM, no pipelining.
# -----------------------------------------------------------------------------
def fused_encoder_pool_kernel(ids_ref, mask_ref, emb_ref, w_ref, ln_ref,
                              bdiag_ref, bsel_ref, out_ref):
    # ids_ref:   VMEM (BS, 1)   int32 -- flattened token ids
    # mask_ref:  VMEM (1, BS)   f32   -- flattened attention mask (0/1)
    # emb_ref:   VMEM (VP, HP)  bf16  -- zero-padded embedding table
    # w_ref:     VMEM (HP, 6HP) bf16  -- [wq|wk|wv|wo|w1|w2], each zero-padded to (HP,HP)
    # ln_ref:    VMEM (4, HP)   f32   -- rows g1, b1, g2, b2 (zero padded)
    # bdiag_ref: VMEM (BS, BS)  f32   -- static block-diagonal (same-batch) pattern
    # bsel_ref:  VMEM (B, BS)   f32   -- static batch->token selector for pooling
    # out_ref:   VMEM (B, HP)   f32   -- pooled, normalized embeddings (cols H..HP zero)
    mask = mask_ref[...]                                   # (1, BS)
    w = w_ref[...]
    ln = ln_ref[...]

    # --- fused embedding lookup: one-hot gather as an MXU matmul ---
    vocab_iota = lax.broadcasted_iota(jnp.int32, (BS, VP), 1)
    onehot = (ids_ref[...] == vocab_iota).astype(jnp.bfloat16)            # (BS, VP)
    x = jnp.dot(onehot, emb_ref[...], preferred_element_type=jnp.float32)  # (BS, HP)
    x_bf = x.astype(jnp.bfloat16)

    # --- fused Q/K/V projection (one MXU push for three weights) ---
    qkv = jnp.dot(x_bf, w[:, 0:3 * HP], preferred_element_type=jnp.float32)  # (BS, 3HP)
    q = qkv[:, 0:HP]
    k = qkv[:, HP:2 * HP]
    v = qkv[:, 2 * HP:3 * HP]

    # --- block-diagonal (per-batch) attention over the flattened token axis ---
    scale = 1.0 / jnp.sqrt(jnp.float32(H))     # padded cols of q/k are zero -> real head dim H
    scores = lax.dot_general(                  # contract last dims (no explicit transpose)
        q.astype(jnp.bfloat16), k.astype(jnp.bfloat16),
        dimension_numbers=(((1,), (1,)), ((), ())),
        preferred_element_type=jnp.float32) * scale                          # (BS, BS)

    attn_valid = (bdiag_ref[...] > 0.0) & (mask > 0.0)                       # (BS, BS)
    scores = jnp.where(attn_valid, scores, NEG_INF)

    scores = scores - jnp.max(scores, axis=-1, keepdims=True)
    p = jnp.exp(scores)
    p = p * pl.reciprocal(jnp.sum(p, axis=-1, keepdims=True), approx=True)   # softmax (f32)

    ctx = jnp.dot(p.astype(jnp.bfloat16), v.astype(jnp.bfloat16),
                  preferred_element_type=jnp.float32)                        # (BS, HP)
    attn = jnp.dot(ctx.astype(jnp.bfloat16), w[:, 3 * HP:4 * HP],
                   preferred_element_type=jnp.float32)                       # (BS, HP)

    # --- layernorm restricted to the real H columns (padded cols stay zero) ---
    col_mask = (lax.broadcasted_iota(jnp.int32, (1, HP), 1) < H).astype(jnp.float32)
    inv_h = jnp.float32(1.0 / H)

    def layer_norm(h, gamma, beta):
        mu = jnp.sum(h * col_mask, axis=-1, keepdims=True) * inv_h
        d = (h - mu) * col_mask
        var = jnp.sum(d * d, axis=-1, keepdims=True) * inv_h
        return d * lax.rsqrt(var + LN_EPS) * gamma + beta

    h1 = layer_norm(x + attn, ln[0:1, :], ln[1:2, :])                        # (BS, HP)

    # --- FFN ---
    # TODO(synk): jax.nn.gelu (tanh approx) vs PyTorch nn.GELU (erf) differ slightly.
    ff = jnp.dot(h1.astype(jnp.bfloat16), w[:, 4 * HP:5 * HP],
                 preferred_element_type=jnp.float32)                         # (BS, FP=HP)
    ff = jax.nn.gelu(ff)
    ff2 = jnp.dot(ff.astype(jnp.bfloat16), w[:, 5 * HP:6 * HP],
                  preferred_element_type=jnp.float32)                        # (BS, HP)

    h2 = layer_norm(h1 + ff2, ln[2:3, :], ln[3:4, :])                        # (BS, HP)

    # --- fused masked mean pooling (as a tiny matmul) + L2 normalize ---
    pool = bsel_ref[...] * mask                                              # (B, BS)
    summed = jnp.dot(pool, h2, preferred_element_type=jnp.float32)           # (B, HP)
    counts = jnp.maximum(jnp.sum(pool, axis=-1, keepdims=True), 1e-9)        # clamp(min=1e-9)
    emb = summed * pl.reciprocal(counts, approx=True)

    ss = jnp.sum(emb * emb, axis=-1, keepdims=True)
    emb = emb * lax.rsqrt(jnp.maximum(ss, 1e-24))     # == emb / max(||emb||, 1e-12)
    out_ref[...] = emb


def sentence_embedding_pallas(ids, mask, emb_tab, w_pack, ln_pack, bdiag, bsel):
    # No grid: whole arrays resident in VMEM, kernel runs once, no double-buffering.
    vmem = lambda: pl.BlockSpec(memory_space=pltpu.MemorySpace.VMEM)
    return pl.pallas_call(
        fused_encoder_pool_kernel,
        out_shape=jax.ShapeDtypeStruct((B, HP), jnp.float32),
        in_specs=[vmem() for _ in range(7)],
        out_specs=vmem(),
    )(ids, mask, emb_tab, w_pack, ln_pack, bdiag, bsel)


# -----------------------------------------------------------------------------
# Wrapper = AutoModelForSentenceEmbedding.forward (normalize=True)
# -----------------------------------------------------------------------------
@jax.jit
def sentence_embedding_forward(input_ids, attention_mask, packed):
    # Only trivial reshapes/casts in the wrapper; everything else is in-kernel.
    ids = input_ids.reshape(BS, 1).astype(jnp.int32)
    mask = attention_mask.reshape(1, BS).astype(jnp.float32)
    emb = sentence_embedding_pallas(ids, mask, packed["emb"], packed["w"],
                                    packed["ln"], packed["bdiag"], packed["bsel"])
    return emb[:, :H]                               # drop lane padding -> (B, H)


# -----------------------------------------------------------------------------
# Parameter init (logical H=32 shapes) + packing into lane-dense padded slabs
# -----------------------------------------------------------------------------
def init_params(key):
    ks = jax.random.split(key, 7)
    s = 0.02
    return {
        "emb": s * jax.random.normal(ks[0], (V, H), jnp.float32),
        "wq": s * jax.random.normal(ks[1], (H, H), jnp.float32),
        "wk": s * jax.random.normal(ks[2], (H, H), jnp.float32),
        "wv": s * jax.random.normal(ks[3], (H, H), jnp.float32),
        "wo": s * jax.random.normal(ks[4], (H, H), jnp.float32),
        "w1": s * jax.random.normal(ks[5], (H, F), jnp.float32),
        "w2": s * jax.random.normal(ks[6], (F, H), jnp.float32),
        "g1": jnp.ones((H,), jnp.float32),
        "b1": jnp.zeros((H,), jnp.float32),
        "g2": jnp.ones((H,), jnp.float32),
        "b2": jnp.zeros((H,), jnp.float32),
    }


def pack_params(p):
    def pad2(w):
        return jnp.zeros((HP, HP), jnp.float32).at[:w.shape[0], :w.shape[1]].set(w)

    def pad1(v):
        return jnp.zeros((HP,), jnp.float32).at[:v.shape[0]].set(v)

    # Packed bf16 weight slab (row padding kept consciously: single lane-dense DMA).
    w_pack = jnp.concatenate(
        [pad2(p["wq"]), pad2(p["wk"]), pad2(p["wv"]),
         pad2(p["wo"]), pad2(p["w1"]), pad2(p["w2"])],
        axis=1).astype(jnp.bfloat16)                                           # (HP, 6*HP)
    ln_pack = jnp.stack(
        [pad1(p["g1"]), pad1(p["b1"]), pad1(p["g2"]), pad1(p["b2"])], axis=0)  # (4, HP)
    emb_pad = (jnp.zeros((VP, HP), jnp.float32)
               .at[:V, :H].set(p["emb"]).astype(jnp.bfloat16))                 # (VP, HP) bf16

    # Static (data-independent) masks, computed once and passed as tiny inputs.
    tok_b = jnp.arange(BS, dtype=jnp.int32) // S
    bdiag = (tok_b[:, None] == tok_b[None, :]).astype(jnp.float32)             # (BS, BS)
    bsel = (jnp.arange(B, dtype=jnp.int32)[:, None] == tok_b[None, :]).astype(jnp.float32)  # (B, BS)
    return {"emb": emb_pad, "w": w_pack, "ln": ln_pack, "bdiag": bdiag, "bsel": bsel}


# -----------------------------------------------------------------------------
# Pure-JAX f32 reference (unpadded) for a correctness check
# -----------------------------------------------------------------------------
def reference_forward(input_ids, attention_mask, p):
    x = jnp.take(p["emb"], input_ids, axis=0)                        # (B, S, H)
    m = attention_mask.astype(jnp.float32)                           # (B, S)
    q = x @ p["wq"]
    k = x @ p["wk"]
    v = x @ p["wv"]
    scores = jnp.einsum("bqh,bkh->bqk", q, k) / jnp.sqrt(jnp.float32(H))
    scores = jnp.where(m[:, None, :] > 0, scores, NEG_INF)
    scores = scores - scores.max(-1, keepdims=True)
    pr = jnp.exp(scores)
    pr = pr / pr.sum(-1, keepdims=True)
    ctx = jnp.einsum("bqk,bkh->bqh", pr, v)
    attn = ctx @ p["wo"]

    def ln(h, g, b):
        mu = h.mean(-1, keepdims=True)
        var = ((h - mu) ** 2).mean(-1, keepdims=True)
        return (h - mu) * lax.rsqrt(var + LN_EPS) * g + b

    h1 = ln(x + attn, p["g1"], p["b1"])
    ff = jax.nn.gelu(h1 @ p["w1"]) @ p["w2"]
    h2 = ln(h1 + ff, p["g2"], p["b2"])

    me = m[:, :, None]
    summed = jnp.sum(h2 * me, axis=1)
    counts = jnp.maximum(me.sum(1), 1e-9)
    emb = summed / counts
    nrm = jnp.sqrt(jnp.sum(emb * emb, axis=1, keepdims=True))
    return emb / jnp.maximum(nrm, 1e-12)


if __name__ == "__main__":
    key = jax.random.PRNGKey(0)
    pkey, ikey = jax.random.split(key)
    params = init_params(pkey)
    packed = pack_params(params)

    input_ids = jax.random.randint(ikey, (B, S), 0, V, dtype=jnp.int32)
    # Mask is passed directly now, so non right-padded masks are supported too.
    attention_mask = jnp.array([[1, 1, 1, 1, 1, 1, 1, 1],
                                [1, 1, 0, 1, 1, 0, 0, 0]], dtype=jnp.int32)

    out = sentence_embedding_forward(input_ids, attention_mask, packed)
    out = jax.block_until_ready(out)

    assert out.shape == (B, H) and out.dtype == jnp.float32
    # embeddings are unit-norm after F.normalize semantics
    norms = jnp.sqrt(jnp.sum(out * out, axis=1))
    assert bool(jnp.all(jnp.abs(norms - 1.0) < 1e-3))
    # matches the f32 reference model (tolerance covers bf16 matmul operands/table)
    ref = reference_forward(input_ids, attention_mask, params)
    max_err = float(jnp.max(jnp.abs(out - ref)))
    assert max_err < 5e-2, f"max abs err vs reference: {max_err}"
    print("KERNEL_OK")
</pallas_src>

<mosaic_0001>
module attributes {stable_mosaic.version = 11 : i64} {
  func.func @fused_encoder_pool_kernel(%arg0: memref<16x1xi32, #tpu.memory_space<vmem>>, %arg1: memref<1x16xf32, #tpu.memory_space<vmem>>, %arg2: memref<128x128xbf16, #tpu.memory_space<vmem>>, %arg3: memref<128x768xbf16, #tpu.memory_space<vmem>>, %arg4: memref<4x128xf32, #tpu.memory_space<vmem>>, %arg5: memref<16x16xf32, #tpu.memory_space<vmem>>, %arg6: memref<2x16xf32, #tpu.memory_space<vmem>>, %arg7: memref<2x128xf32, #tpu.memory_space<vmem>>) attributes {dimension_semantics = [], scalar_prefetch = 0 : i64, scratch_operands = 0 : i64, tpu.core_type = #tpu.core_type<tc>} {
    %c0 = arith.constant 0 : index
    %c0_0 = arith.constant 0 : index
    %0 = vector.load %arg1[%c0, %c0_0] : memref<1x16xf32, #tpu.memory_space<vmem>>, vector<1x16xf32>
    %c0_1 = arith.constant 0 : index
    %c0_2 = arith.constant 0 : index
    %1 = vector.load %arg3[%c0_1, %c0_2] : memref<128x768xbf16, #tpu.memory_space<vmem>>, vector<128x768xbf16>
    %c0_3 = arith.constant 0 : index
    %c0_4 = arith.constant 0 : index
    %2 = vector.load %arg4[%c0_3, %c0_4] : memref<4x128xf32, #tpu.memory_space<vmem>>, vector<4x128xf32>
    %3 = tpu.iota {dimensions = array<i32: 1>} : vector<16x128xi32>
    %c0_5 = arith.constant 0 : index
    %c0_6 = arith.constant 0 : index
    %4 = vector.load %arg0[%c0_5, %c0_6] : memref<16x1xi32, #tpu.memory_space<vmem>>, vector<16x1xi32>
    %5 = vector.broadcast %4 : vector<16x1xi32> to vector<16x128xi32>
    %6 = arith.cmpi eq, %5, %3 : vector<16x128xi32>
    %7 = arith.extui %6 : vector<16x128xi1> to vector<16x128xi32>
    %8 = arith.sitofp %7 : vector<16x128xi32> to vector<16x128xf32>
    %9 = arith.truncf %8 : vector<16x128xf32> to vector<16x128xbf16>
    %c0_7 = arith.constant 0 : index
    %c0_8 = arith.constant 0 : index
    %10 = vector.load %arg2[%c0_7, %c0_8] : memref<128x128xbf16, #tpu.memory_space<vmem>>, vector<128x128xbf16>
    %cst = arith.constant dense<0.000000e+00> : vector<16x128xf32>
    %11 = tpu.matmul %9, %10, %cst {dimension_numbers = #tpu.dot_dimension_numbers<[1], [0], [0], [1], [0, 0, 1, 1], [], []>} : vector<16x128xbf16>, vector<128x128xbf16>, vector<16x128xf32> -> vector<16x128xf32>
    %12 = arith.truncf %11 : vector<16x128xf32> to vector<16x128xbf16>
    %13 = vector.extract_strided_slice %1 {offsets = [0, 0], sizes = [128, 384], strides = [1, 1]} : vector<128x768xbf16> to vector<128x384xbf16>
    %cst_9 = arith.constant dense<0.000000e+00> : vector<16x384xf32>
    %14 = tpu.matmul %12, %13, %cst_9 {dimension_numbers = #tpu.dot_dimension_numbers<[1], [0], [0], [1], [0, 0, 1, 1], [], []>} : vector<16x128xbf16>, vector<128x384xbf16>, vector<16x384xf32> -> vector<16x384xf32>
    %15 = vector.extract_strided_slice %14 {offsets = [0, 0], sizes = [16, 128], strides = [1, 1]} : vector<16x384xf32> to vector<16x128xf32>
    %16 = vector.extract_strided_slice %14 {offsets = [0, 128], sizes = [16, 128], strides = [1, 1]} : vector<16x384xf32> to vector<16x128xf32>
    %17 = vector.extract_strided_slice %14 {offsets = [0, 256], sizes = [16, 128], strides = [1, 1]} : vector<16x384xf32> to vector<16x128xf32>
    %cst_10 = arith.constant 3.200000e+01 : f32
    %18 = math.sqrt %cst_10 : f32
    %cst_11 = arith.constant 1.000000e+00 : f32
    %19 = arith.divf %cst_11, %18 : f32
    %20 = arith.truncf %15 : vector<16x128xf32> to vector<16x128xbf16>
    %21 = arith.truncf %16 : vector<16x128xf32> to vector<16x128xbf16>
    %cst_12 = arith.constant dense<0.000000e+00> : vector<16x16xf32>
    %22 = tpu.matmul %20, %21, %cst_12 {dimension_numbers = #tpu.dot_dimension_numbers<[1], [1], [0], [0], [0, 0, 1, 0], [], []>} : vector<16x128xbf16>, vector<16x128xbf16>, vector<16x16xf32> -> vector<16x16xf32>
    %23 = vector.broadcast %19 : f32 to vector<16x16xf32>
    %24 = arith.mulf %22, %23 : vector<16x16xf32>
    %c0_13 = arith.constant 0 : index
    %c0_14 = arith.constant 0 : index
    %25 = vector.load %arg5[%c0_13, %c0_14] : memref<16x16xf32, #tpu.memory_space<vmem>>, vector<16x16xf32>
    %cst_15 = arith.constant 0.000000e+00 : f32
    %26 = vector.broadcast %cst_15 : f32 to vector<16x16xf32>
    %27 = arith.cmpf ogt, %25, %26 : vector<16x16xf32>
    %cst_16 = arith.constant 0.000000e+00 : f32
    %28 = vector.broadcast %cst_16 : f32 to vector<1x16xf32>
    %29 = arith.cmpf ogt, %0, %28 : vector<1x16xf32>
    %30 = vector.broadcast %29 : vector<1x16xi1> to vector<16x16xi1>
    %31 = arith.andi %27, %30 : vector<16x16xi1>
    %cst_17 = arith.constant -1.000000e+09 : f32
    %32 = vector.broadcast %cst_17 : f32 to vector<16x16xf32>
    %33 = arith.select %31, %24, %32 : vector<16x16xi1>, vector<16x16xf32>
    %cst_18 = arith.constant dense<0xFF800000> : vector<16xf32>
    %34 = vector.multi_reduction <maximumf>, %33, %cst_18 [1] : vector<16x16xf32> to vector<16xf32>
    %35 = vector.shape_cast %34 : vector<16xf32> to vector<16x1xf32>
    %36 = vector.broadcast %35 : vector<16x1xf32> to vector<16x16xf32>
    %37 = arith.subf %33, %36 : vector<16x16xf32>
    %38 = math.exp %37 : vector<16x16xf32>
    %cst_19 = arith.constant dense<0.000000e+00> : vector<16xf32>
    %39 = vector.multi_reduction <add>, %38, %cst_19 [1] : vector<16x16xf32> to vector<16xf32>
    %40 = vector.shape_cast %39 : vector<16xf32> to vector<16x1xf32>
    %41 = tpu.reciprocal %40 {approx = true} : vector<16x1xf32> -> vector<16x1xf32>
    %42 = vector.broadcast %41 : vector<16x1xf32> to vector<16x16xf32>
    %43 = arith.mulf %38, %42 : vector<16x16xf32>
    %44 = arith.truncf %43 : vector<16x16xf32> to vector<16x16xbf16>
    %45 = arith.truncf %17 : vector<16x128xf32> to vector<16x128xbf16>
    %cst_20 = arith.constant dense<0.000000e+00> : vector<16x128xf32>
    %46 = tpu.matmul %44, %45, %cst_20 {dimension_numbers = #tpu.dot_dimension_numbers<[1], [0], [0], [1], [0, 0, 1, 1], [], []>} : vector<16x16xbf16>, vector<16x128xbf16>, vector<16x128xf32> -> vector<16x128xf32>
    %47 = arith.truncf %46 : vector<16x128xf32> to vector<16x128xbf16>
    %48 = vector.extract_strided_slice %1 {offsets = [0, 384], sizes = [128, 128], strides = [1, 1]} : vector<128x768xbf16> to vector<128x128xbf16>
    %cst_21 = arith.constant dense<0.000000e+00> : vector<16x128xf32>
    %49 = tpu.matmul %47, %48, %cst_21 {dimension_numbers = #tpu.dot_dimension_numbers<[1], [0], [0], [1], [0, 0, 1, 1], [], []>} : vector<16x128xbf16>, vector<128x128xbf16>, vector<16x128xf32> -> vector<16x128xf32>
    %50 = tpu.iota {dimensions = array<i32: 1>} : vector<1x128xi32>
    %c32_i32 = arith.constant 32 : i32
    %51 = vector.broadcast %c32_i32 : i32 to vector<1x128xi32>
    %52 = arith.cmpi slt, %50, %51 : vector<1x128xi32>
    %53 = arith.extui %52 : vector<1x128xi1> to vector<1x128xi32>
    %54 = arith.sitofp %53 : vector<1x128xi32> to vector<1x128xf32>
    %55 = arith.addf %11, %49 : vector<16x128xf32>
    %56 = vector.extract_strided_slice %2 {offsets = [0, 0], sizes = [1, 128], strides = [1, 1]} : vector<4x128xf32> to vector<1x128xf32>
    %57 = vector.extract_strided_slice %2 {offsets = [1, 0], sizes = [1, 128], strides = [1, 1]} : vector<4x128xf32> to vector<1x128xf32>
    %58 = vector.broadcast %54 : vector<1x128xf32> to vector<16x128xf32>
    %59 = arith.mulf %55, %58 : vector<16x128xf32>
    %cst_22 = arith.constant dense<0.000000e+00> : vector<16xf32>
    %60 = vector.multi_reduction <add>, %59, %cst_22 [1] : vector<16x128xf32> to vector<16xf32>
    %61 = vector.shape_cast %60 : vector<16xf32> to vector<16x1xf32>
    %cst_23 = arith.constant 3.125000e-02 : f32
    %62 = vector.broadcast %cst_23 : f32 to vector<16x1xf32>
    %63 = arith.mulf %61, %62 : vector<16x1xf32>
    %64 = vector.broadcast %63 : vector<16x1xf32> to vector<16x128xf32>
    %65 = arith.subf %55, %64 : vector<16x128xf32>
    %66 = vector.broadcast %54 : vector<1x128xf32> to vector<16x128xf32>
    %67 = arith.mulf %65, %66 : vector<16x128xf32>
    %68 = arith.mulf %67, %67 : vector<16x128xf32>
    %cst_24 = arith.constant dense<0.000000e+00> : vector<16xf32>
    %69 = vector.multi_reduction <add>, %68, %cst_24 [1] : vector<16x128xf32> to vector<16xf32>
    %70 = vector.shape_cast %69 : vector<16xf32> to vector<16x1xf32>
    %cst_25 = arith.constant 3.125000e-02 : f32
    %71 = vector.broadcast %cst_25 : f32 to vector<16x1xf32>
    %72 = arith.mulf %70, %71 : vector<16x1xf32>
    %cst_26 = arith.constant 9.99999996E-13 : f32
    %73 = vector.broadcast %cst_26 : f32 to vector<16x1xf32>
    %74 = arith.addf %72, %73 : vector<16x1xf32>
    %75 = math.rsqrt %74 : vector<16x1xf32>
    %76 = vector.broadcast %75 : vector<16x1xf32> to vector<16x128xf32>
    %77 = arith.mulf %67, %76 : vector<16x128xf32>
    %78 = vector.broadcast %56 : vector<1x128xf32> to vector<16x128xf32>
    %79 = arith.mulf %77, %78 : vector<16x128xf32>
    %80 = vector.broadcast %57 : vector<1x128xf32> to vector<16x128xf32>
    %81 = arith.addf %79, %80 : vector<16x128xf32>
    %82 = arith.truncf %81 : vector<16x128xf32> to vector<16x128xbf16>
    %83 = vector.extract_strided_slice %1 {offsets = [0, 512], sizes = [128, 128], strides = [1, 1]} : vector<128x768xbf16> to vector<128x128xbf16>
    %cst_27 = arith.constant dense<0.000000e+00> : vector<16x128xf32>
    %84 = tpu.matmul %82, %83, %cst_27 {dimension_numbers = #tpu.dot_dimension_numbers<[1], [0], [0], [1], [0, 0, 1, 1], [], []>} : vector<16x128xbf16>, vector<128x128xbf16>, vector<16x128xf32> -> vector<16x128xf32>
    %85 = arith.mulf %84, %84 : vector<16x128xf32>
    %86 = arith.mulf %84, %85 : vector<16x128xf32>
    %cst_28 = arith.constant 4.471500e-02 : f32
    %87 = vector.broadcast %cst_28 : f32 to vector<16x128xf32>
    %88 = arith.mulf %87, %86 : vector<16x128xf32>
    %89 = arith.addf %84, %88 : vector<16x128xf32>
    %cst_29 = arith.constant 0.797884583 : f32
    %90 = vector.broadcast %cst_29 : f32 to vector<16x128xf32>
    %91 = arith.mulf %90, %89 : vector<16x128xf32>
    %92 = math.tanh %91 : vector<16x128xf32>
    %cst_30 = arith.constant 1.000000e+00 : f32
    %93 = vector.broadcast %cst_30 : f32 to vector<16x128xf32>
    %94 = arith.addf %93, %92 : vector<16x128xf32>
    %cst_31 = arith.constant 5.000000e-01 : f32
    %95 = vector.broadcast %cst_31 : f32 to vector<16x128xf32>
    %96 = arith.mulf %95, %94 : vector<16x128xf32>
    %97 = arith.mulf %84, %96 : vector<16x128xf32>
    %98 = arith.truncf %97 : vector<16x128xf32> to vector<16x128xbf16>
    %99 = vector.extract_strided_slice %1 {offsets = [0, 640], sizes = [128, 128], strides = [1, 1]} : vector<128x768xbf16> to vector<128x128xbf16>
    %cst_32 = arith.constant dense<0.000000e+00> : vector<16x128xf32>
    %100 = tpu.matmul %98, %99, %cst_32 {dimension_numbers = #tpu.dot_dimension_numbers<[1], [0], [0], [1], [0, 0, 1, 1], [], []>} : vector<16x128xbf16>, vector<128x128xbf16>, vector<16x128xf32> -> vector<16x128xf32>
    %101 = arith.addf %81, %100 : vector<16x128xf32>
    %102 = vector.extract_strided_slice %2 {offsets = [2, 0], sizes = [1, 128], strides = [1, 1]} : vector<4x128xf32> to vector<1x128xf32>
    %103 = vector.extract_strided_slice %2 {offsets = [3, 0], sizes = [1, 128], strides = [1, 1]} : vector<4x128xf32> to vector<1x128xf32>
    %104 = vector.broadcast %54 : vector<1x128xf32> to vector<16x128xf32>
    %105 = arith.mulf %101, %104 : vector<16x128xf32>
    %cst_33 = arith.constant dense<0.000000e+00> : vector<16xf32>
    %106 = vector.multi_reduction <add>, %105, %cst_33 [1] : vector<16x128xf32> to vector<16xf32>
    %107 = vector.shape_cast %106 : vector<16xf32> to vector<16x1xf32>
    %cst_34 = arith.constant 3.125000e-02 : f32
    %108 = vector.broadcast %cst_34 : f32 to vector<16x1xf32>
    %109 = arith.mulf %107, %108 : vector<16x1xf32>
    %110 = vector.broadcast %109 : vector<16x1xf32> to vector<16x128xf32>
    %111 = arith.subf %101, %110 : vector<16x128xf32>
    %112 = vector.broadcast %54 : vector<1x128xf32> to vector<16x128xf32>
    %113 = arith.mulf %111, %112 : vector<16x128xf32>
    %114 = arith.mulf %113, %113 : vector<16x128xf32>
    %cst_35 = arith.constant dense<0.000000e+00> : vector<16xf32>
    %115 = vector.multi_reduction <add>, %114, %cst_35 [1] : vector<16x128xf32> to vector<16xf32>
    %116 = vector.shape_cast %115 : vector<16xf32> to vector<16x1xf32>
    %cst_36 = arith.constant 3.125000e-02 : f32
    %117 = vector.broadcast %cst_36 : f32 to vector<16x1xf32>
    %118 = arith.mulf %116, %117 : vector<16x1xf32>
    %cst_37 = arith.constant 9.99999996E-13 : f32
    %119 = vector.broadcast %cst_37 : f32 to vector<16x1xf32>
    %120 = arith.addf %118, %119 : vector<16x1xf32>
    %121 = math.rsqrt %120 : vector<16x1xf32>
    %122 = vector.broadcast %121 : vector<16x1xf32> to vector<16x128xf32>
    %123 = arith.mulf %113, %122 : vector<16x128xf32>
    %124 = vector.broadcast %102 : vector<1x128xf32> to vector<16x128xf32>
    %125 = arith.mulf %123, %124 : vector<16x128xf32>
    %126 = vector.broadcast %103 : vector<1x128xf32> to vector<16x128xf32>
    %127 = arith.addf %125, %126 : vector<16x128xf32>
    %c0_38 = arith.constant 0 : index
    %c0_39 = arith.constant 0 : index
    %128 = vector.load %arg6[%c0_38, %c0_39] : memref<2x16xf32, #tpu.memory_space<vmem>>, vector<2x16xf32>
    %129 = vector.broadcast %0 : vector<1x16xf32> to vector<2x16xf32>
    %130 = arith.mulf %128, %129 : vector<2x16xf32>
    %cst_40 = arith.constant dense<0.000000e+00> : vector<2x128xf32>
    %131 = tpu.matmul %130, %127, %cst_40 {dimension_numbers = #tpu.dot_dimension_numbers<[1], [0], [0], [1], [0, 0, 1, 1], [], []>} : vector<2x16xf32>, vector<16x128xf32>, vector<2x128xf32> -> vector<2x128xf32>
    %cst_41 = arith.constant dense<0.000000e+00> : vector<2xf32>
    %132 = vector.multi_reduction <add>, %130, %cst_41 [1] : vector<2x16xf32> to vector<2xf32>
    %133 = vector.shape_cast %132 : vector<2xf32> to vector<2x1xf32>
    %cst_42 = arith.constant 9.99999971E-10 : f32
    %134 = vector.broadcast %cst_42 : f32 to vector<2x1xf32>
    %135 = arith.maximumf %133, %134 : vector<2x1xf32>
    %136 = tpu.reciprocal %135 {approx = true} : vector<2x1xf32> -> vector<2x1xf32>
    %137 = vector.broadcast %136 : vector<2x1xf32> to vector<2x128xf32>
    %138 = arith.mulf %131, %137 : vector<2x128xf32>
    %139 = arith.mulf %138, %138 : vector<2x128xf32>
    %cst_43 = arith.constant dense<0.000000e+00> : vector<2xf32>
    %140 = vector.multi_reduction <add>, %139, %cst_43 [1] : vector<2x128xf32> to vector<2xf32>
    %141 = vector.shape_cast %140 : vector<2xf32> to vector<2x1xf32>
    %cst_44 = arith.constant 1.000000e-24 : f32
    %142 = vector.broadcast %cst_44 : f32 to vector<2x1xf32>
    %143 = arith.maximumf %141, %142 : vector<2x1xf32>
    %144 = math.rsqrt %143 : vector<2x1xf32>
    %145 = vector.broadcast %144 : vector<2x1xf32> to vector<2x128xf32>
    %146 = arith.mulf %138, %145 : vector<2x128xf32>
    %c0_45 = arith.constant 0 : index
    %c0_46 = arith.constant 0 : index
    %147 = vector.load %arg7[%c0_45, %c0_46] : memref<2x128xf32, #tpu.memory_space<vmem>>, vector<2x128xf32>
    tpu.vector_store %arg7[%c0_45, %c0_46], %146 {strides = array<i32>} : memref<2x128xf32, #tpu.memory_space<vmem>>, vector<2x128xf32>,
    return
  }
}

</mosaic_0001>

<llo_original>
// kernel: sentence_embedding_forward.1
$region0: #{sentence_embedding_forward.1}
  #allocation0 [shape = 'u32[]', space=smem, size = 0x4, offset = 0x4, fixed_abs, tag = 'smem constant byte address 0x4 - core index']
  #allocation1 [shape = 'u32[144,128]{1,0:T(1,128)}', space=vmem, size = 0x12000, scoped, tag = 'internal scratch']
  %s0 = inlined_call_operand.vmem [shape: s32[16,1], index: 0, kind: input, shape index: {}]
  %s1 = inlined_call_operand.vmem [shape: f32[1,16], index: 1, kind: input, shape index: {}]
  %s2 = inlined_call_operand.hbm [shape: bf16[128,128], index: 2, kind: input, shape index: {}]
  %s3 = inlined_call_operand.hbm [shape: bf16[128,768], index: 3, kind: input, shape index: {}]
  %s4 = inlined_call_operand.vmem [shape: f32[4,128], index: 4, kind: input, shape index: {}]
  %s5 = inlined_call_operand.vmem [shape: f32[16,16], index: 5, kind: input, shape index: {}]
  %s6 = inlined_call_operand.vmem [shape: f32[2,16], index: 6, kind: input, shape index: {}]
  %s7 = inlined_call_operand.hbm [shape: f32[2,128], index: 7, kind: output, shape index: {}]
  %s8 = sld [smem:[#allocation0]]
  $region46: #{sentence_embedding_forward.1} parent=0
    _
  %s10 = ssub.s32 1, %s8
  %s11 = scalar_select 0, %s10, %s8
  $region1: #{sentence_embedding_forward.1} parent=0
    #allocation2 [shape = 'u8[32768]{0}', space=vmem, size = 0x8000, scoped, tag = 'input window, operand 2, single buffered']
    #allocation3 [shape = 's32[1]{0}', space=sflag, size = 0x4, scoped, tag = 'scoped memory for sentence_embedding_forward.1']
    #allocation4 [shape = 's32[1]{0}', space=sflag, size = 0x4, scoped, tag = 'scoped memory for sentence_embedding_forward.1']
    #allocation5 [shape = 'u8[196608]{0}', space=vmem, size = 0x30000, scoped, tag = 'input window, operand 3, single buffered']
    #allocation6 [shape = 's32[1]{0}', space=sflag, size = 0x4, scoped, tag = 'scoped memory for sentence_embedding_forward.1']
    #allocation7 [shape = 'u8[1024]{0}', space=vmem, size = 0x400, scoped, tag = 'output window, operand 0, single buffered']
    %12 = vsyncpa [#allocation3], 0
    %13 = vsyncpa [#allocation6], 0
    %14 = vsyncpa [#allocation4], 0
    // Predicated region
    $region2: #{sentence_embedding_forward.1} parent=1 // pred_check
      _
    $region3: #{sentence_embedding_forward.1} parent=1 // pred_check_branch
      %16 = sbr.rel (0) target = $region5
    $region4: #{sentence_embedding_forward.1} parent=1 // pred_region
      _
    $region5: #{sentence_embedding_forward.1} parent=1 // pred_fallthru
      _
    // Predicated region
    $region6: #{sentence_embedding_forward.1} parent=1 // pred_check
      _
    $region7: #{sentence_embedding_forward.1} parent=1 // pred_check_branch
      %18 = sbr.rel (0) target = $region9
    $region8: #{sentence_embedding_forward.1} parent=1 // pred_region
      _
    $region9: #{sentence_embedding_forward.1} parent=1 // pred_fallthru
      _
    // Predicated region
    $region10: #{sentence_embedding_forward.1} parent=1 // pred_check
      _
    $region11: #{sentence_embedding_forward.1} parent=1 // pred_check_branch
      %20 = sbr.rel (0) target = $region13
    $region12: #{sentence_embedding_forward.1} parent=1 // pred_region
      %s22 = ssub.s32 1024, 1024
      %23 = vsyncadd [#allocation3], %s22
      %s24 = sshll.u32 [#allocation2], 4
      %s25 = int_to_ptr.vmem [resolvable:$true] %s24
      %30 = dma.hbm_to_vmem [thread:$0]  %s2, 1024, %s25, [#allocation3], 64, 64, 4
    $region13: #{sentence_embedding_forward.1} parent=1 // pred_fallthru
      _
    // Predicated region
    $region14: #{sentence_embedding_forward.1} parent=1 // pred_check
      _
    $region15: #{sentence_embedding_forward.1} parent=1 // pred_check_branch
      %32 = sbr.rel (0) target = $region17
    $region16: #{sentence_embedding_forward.1} parent=1 // pred_region
      %s34 = ssub.s32 6144, 6144
      %35 = vsyncadd [#allocation6], %s34
      %s36 = sshll.u32 [#allocation5], 4
      %s37 = int_to_ptr.vmem [resolvable:$true] %s36
      %42 = dma.hbm_to_vmem [thread:$0]  %s3, 6144, %s37, [#allocation6], 384, 384, 24
    $region17: #{sentence_embedding_forward.1} parent=1 // pred_fallthru
      _
    // Predicated region
    $region18: #{sentence_embedding_forward.1} parent=1 // pred_check
      _
    $region19: #{sentence_embedding_forward.1} parent=1 // pred_check_branch
      %44 = sbr.rel (0) target = $region21
    $region20: #{sentence_embedding_forward.1} parent=1 // pred_region
      _
    $region21: #{sentence_embedding_forward.1} parent=1 // pred_fallthru
      _
    // Predicated region
    $region22: #{sentence_embedding_forward.1} parent=1 // pred_check
      _
    $region23: #{sentence_embedding_forward.1} parent=1 // pred_check_branch
      %46 = sbr.rel (0) target = $region25
    $region24: #{sentence_embedding_forward.1} parent=1 // pred_region
      _
    $region25: #{sentence_embedding_forward.1} parent=1 // pred_fallthru
      _
    // Predicated region
    $region26: #{sentence_embedding_forward.1} parent=1 // pred_check
      _
    $region27: #{sentence_embedding_forward.1} parent=1 // pred_check_branch
      %48 = sbr.rel (0) target = $region29
    $region28: #{sentence_embedding_forward.1} parent=1 // pred_region
      _
    $region29: #{sentence_embedding_forward.1} parent=1 // pred_fallthru
      _
    // Predicated region
    $region30: #{sentence_embedding_forward.1} parent=1 // pred_check
      _
    $region31: #{sentence_embedding_forward.1} parent=1 // pred_check_branch
      %50 = sbr.rel (0) target = $region33
    $region32: #{sentence_embedding_forward.1} parent=1 // pred_region
      %51 = dma.done [#allocation3], 1024
    $region33: #{sentence_embedding_forward.1} parent=1 // pred_fallthru
      _
    // Predicated region
    $region34: #{sentence_embedding_forward.1} parent=1 // pred_check
      _
    $region35: #{sentence_embedding_forward.1} parent=1 // pred_check_branch
      %53 = sbr.rel (0) target = $region37
    $region36: #{sentence_embedding_forward.1} parent=1 // pred_region
      %54 = dma.done [#allocation6], 6144
    $region37: #{sentence_embedding_forward.1} parent=1 // pred_fallthru
      _
    %v56 = vld [vmem:[%s1] sm:$0x1]
    %v57 = vld [vmem:[#allocation5] sm:$0xff]
    %v58 = vld [vmem:[#allocation5 + $0x8] sm:$0xff]
    %v59 = vld [vmem:[#allocation5 + $0x10] sm:$0xff]
    %v60 = vld [vmem:[#allocation5 + $0x18] sm:$0xff]
    %v61 = vld [vmem:[#allocation5 + $0x20] sm:$0xff]
    %v62 = vld [vmem:[#allocation5 + $0x28] sm:$0xff]
    %v63 = vld [vmem:[#allocation5 + $0x30] sm:$0xff]
    %v64 = vld [vmem:[#allocation5 + $0x38] sm:$0xff]
    %v65 = vld [vmem:[#allocation5 + $0x40] sm:$0xff]
    %v66 = vld [vmem:[#allocation5 + $0x48] sm:$0xff]
    %v67 = vld [vmem:[#allocation5 + $0x50] sm:$0xff]
    %v68 = vld [vmem:[#allocation5 + $0x58] sm:$0xff]
    %v69 = vld [vmem:[#allocation5 + $0x60] sm:$0xff]
    %v70 = vld [vmem:[#allocation5 + $0x68] sm:$0xff]
    %v71 = vld [vmem:[#allocation5 + $0x70] sm:$0xff]
    %v72 = vld [vmem:[#allocation5 + $0x78] sm:$0xff]
    %v73 = vld [vmem:[#allocation5 + $0x80] sm:$0xff]
    %v74 = vld [vmem:[#allocation5 + $0x88] sm:$0xff]
    %v75 = vld [vmem:[#allocation5 + $0x90] sm:$0xff]
    %v76 = vld [vmem:[#allocation5 + $0x98] sm:$0xff]
    %v77 = vld [vmem:[#allocation5 + $0xa0] sm:$0xff]
    %v78 = vld [vmem:[#allocation5 + $0xa8] sm:$0xff]
    %v79 = vld [vmem:[#allocation5 + $0xb0] sm:$0xff]
    %v80 = vld [vmem:[#allocation5 + $0xb8] sm:$0xff]
    %v81 = vld [vmem:[#allocation5 + $0xc0] sm:$0xff]
    %v82 = vld [vmem:[#allocation5 + $0xc8] sm:$0xff]
    %v83 = vld [vmem:[#allocation5 + $0xd0] sm:$0xff]
    %v84 = vld [vmem:[#allocation5 + $0xd8] sm:$0xff]
    %v85 = vld [vmem:[#allocation5 + $0xe0] sm:$0xff]
    %v86 = vld [vmem:[#allocation5 + $0xe8] sm:$0xff]
    %v87 = vld [vmem:[#allocation5 + $0xf0] sm:$0xff]
    %v88 = vld [vmem:[#allocation5 + $0xf8] sm:$0xff]
    %v89 = vld [vmem:[#allocation5 + $0x100] sm:$0xff]
    %v90 = vld [vmem:[#allocation5 + $0x108] sm:$0xff]
    %v91 = vld [vmem:[#allocation5 + $0x110] sm:$0xff]
    %v92 = vld [vmem:[#allocation5 + $0x118] sm:$0xff]
    %v93 = vld [vmem:[#allocation5 + $0x120] sm:$0xff]
    %v94 = vld [vmem:[#allocation5 + $0x128] sm:$0xff]
    %v95 = vld [vmem:[#allocation5 + $0x130] sm:$0xff]
    %v96 = vld [vmem:[#allocation5 + $0x138] sm:$0xff]
    %v97 = vld [vmem:[#allocation5 + $0x140] sm:$0xff]
    %v98 = vld [vmem:[#allocation5 + $0x148] sm:$0xff]
    %v99 = vld [vmem:[#allocation5 + $0x150] sm:$0xff]
    %v100 = vld [vmem:[#allocation5 + $0x158] sm:$0xff]
    %v101 = vld [vmem:[#allocation5 + $0x160] sm:$0xff]
    %v102 = vld [vmem:[#allocation5 + $0x168] sm:$0xff]
    %v103 = vld [vmem:[#allocation5 + $0x170] sm:$0xff]
    %v104 = vld [vmem:[#allocation5 + $0x178] sm:$0xff]
    %v105 = vld [vmem:[%s4] sm:$0xf]
    %v106 = vlaneseq
    %v107 = vand.u32 %v106, 127
    %v108 = vld [vmem:[%s0] sm:$0xff]
    %v109 = vld [vmem:[%s0 + $0x8] sm:$0xff]
    %110 = vset.pattern.permute.xlu0 0
    %111 = vperm.xlu0 %110, %v108
    %v112 = vpop.permute.xlu0 %111
    %113 = vset.pattern.permute.xlu0 0
    %114 = vperm.xlu0 %113, %v109
    %v115 = vpop.permute.xlu0 %114
    %vm116 = vcmp.eq.s32.totalorder %v112, %v107
    %vm117 = vcmp.eq.s32.totalorder %v115, %v107
    %v118 = vsel %vm116, 1, 0
    %v119 = vsel %vm117, 1, 0
    %v120 = vcvt.s32.f32 %v118
    %v121 = vcvt.s32.f32 %v119
    %v122 = vpack.c.bf16 %v121, %v120
    %v123 = vld [vmem:[#allocation2] sm:$0xf]
    %v124 = vld [vmem:[#allocation2 + $0x4] sm:$0xf]
    %v125 = vld [vmem:[#allocation2 + $0x8] sm:$0xf]
    %v126 = vld [vmem:[#allocation2 + $0xc] sm:$0xf]
    %v127 = vld [vmem:[#allocation2 + $0x10] sm:$0xf]
    %v128 = vld [vmem:[#allocation2 + $0x14] sm:$0xf]
    %v129 = vld [vmem:[#allocation2 + $0x18] sm:$0xf]
    %v130 = vld [vmem:[#allocation2 + $0x1c] sm:$0xf]
    %v131 = vld [vmem:[#allocation2 + $0x20] sm:$0xf]
    %v132 = vld [vmem:[#allocation2 + $0x24] sm:$0xf]
    %v133 = vld [vmem:[#allocation2 + $0x28] sm:$0xf]
    %v134 = vld [vmem:[#allocation2 + $0x2c] sm:$0xf]
    %v135 = vld [vmem:[#allocation2 + $0x30] sm:$0xf]
    %v136 = vld [vmem:[#allocation2 + $0x34] sm:$0xf]
    %v137 = vld [vmem:[#allocation2 + $0x38] sm:$0xf]
    %v138 = vld [vmem:[#allocation2 + $0x3c] sm:$0xf]
    %v155 = vunpack.c.l.b16 %v123
    %v156 = vunpack.c.l.b16 %v124
    %v157 = vunpack.c.l.b16 %v125
    %v158 = vunpack.c.l.b16 %v126
    %v159 = vunpack.c.l.b16 %v127
    %v160 = vunpack.c.l.b16 %v128
    %v161 = vunpack.c.l.b16 %v129
    %v162 = vunpack.c.l.b16 %v130
    %v163 = vunpack.c.l.b16 %v131
    %v164 = vunpack.c.l.b16 %v132
    %v165 = vunpack.c.l.b16 %v133
    %v166 = vunpack.c.l.b16 %v134
    %v167 = vunpack.c.l.b16 %v135
    %v168 = vunpack.c.l.b16 %v136
    %v169 = vunpack.c.l.b16 %v137
    %v170 = vunpack.c.l.b16 %v138
    %v171 = vpack.c.b16 %v156, %v155
    %v172 = vpack.c.b16 %v158, %v157
    %v173 = vpack.c.b16 %v160, %v159
    %v174 = vpack.c.b16 %v162, %v161
    %v175 = vpack.c.b16 %v164, %v163
    %v176 = vpack.c.b16 %v166, %v165
    %v177 = vpack.c.b16 %v168, %v167
    %v178 = vpack.c.b16 %v170, %v169
    %187 = vmatprep.subr.bf16.mxu0 0
    %188 = vmatpush1.bf16.msra.mxu0 %v171
    %189 = vmatprep.subr.bf16.mxu0 0
    %190 = vmatpush1.bf16.msra.mxu0 %v172
    %191 = vmatprep.subr.bf16.mxu0 0
    %192 = vmatpush1.bf16.msra.mxu0 %v173
    %193 = vmatprep.subr.bf16.mxu0 0
    %194 = vmatpush1.bf16.msra.mxu0 %v174
    %195 = vmatprep.subr.bf16.mxu0 0
    %196 = vmatpush1.bf16.msra.mxu0 %v175
    %197 = vmatprep.subr.bf16.mxu0 0
    %198 = vmatpush1.bf16.msra.mxu0 %v176
    %199 = vmatprep.subr.bf16.mxu0 0
    %200 = vmatpush1.bf16.msra.mxu0 %v177
    %201 = vmatprep.subr.bf16.mxu0 0
    %202 = vmatpush1.bf16.msra.mxu0 %v178
    %203 = vmatprep.subr.bf16.mxu0 0
    %204 = vmatpush1.bf16.msra.mxu0 0
    %205 = vmatprep.subr.bf16.mxu0 0
    %206 = vmatpush1.bf16.msra.mxu0 0
    %207 = vmatprep.subr.bf16.mxu0 0
    %208 = vmatpush1.bf16.msra.mxu0 0
    %209 = vmatprep.subr.bf16.mxu0 0
    %210 = vmatpush1.bf16.msra.mxu0 0
    %211 = vmatprep.subr.bf16.mxu0 0
    %212 = vmatpush1.bf16.msra.mxu0 0
    %213 = vmatprep.subr.bf16.mxu0 0
    %214 = vmatpush1.bf16.msra.mxu0 0
    %215 = vmatprep.subr.bf16.mxu0 0
    %216 = vmatpush1.bf16.msra.mxu0 0
    %217 = vmatprep.subr.bf16.mxu0 0
    %218 = vmatpush1.bf16.msra.mxu0 0
    %219 = vmatprep.mubr.bf16.mxu0 0
    %220 = vmatmul.mubr.bf16.gmra.mrb[0].mxu0 %v122
    %v221 = vpop.f32.mrb[0].mxu0
    %v222 = vadd.f32 0.0, %v221
    %v223 = vpop.f32.mrb[0].mxu0
    %v224 = vpop.f32.mrb[0].mxu0
    %v225 = vadd.f32 0.0, %v224
    %v226 = vpop.f32.mrb[0].mxu0
    %227 = vdwg.mxu0
    %v228 = vpack.c.bf16 %v225, %v222
    %v261 = vunpack.c.l.b16 %v57
    %v262 = vunpack.c.h.b16 %v57
    %v263 = vunpack.c.l.b16 %v58
    %v264 = vunpack.c.l.b16 %v60
    %v265 = vunpack.c.h.b16 %v60
    %v266 = vunpack.c.l.b16 %v61
    %v267 = vunpack.c.l.b16 %v63
    %v268 = vunpack.c.h.b16 %v63
    %v269 = vunpack.c.l.b16 %v64
    %v270 = vunpack.c.l.b16 %v66
    %v271 = vunpack.c.h.b16 %v66
    %v272 = vunpack.c.l.b16 %v67
    %v273 = vunpack.c.l.b16 %v69
    %v274 = vunpack.c.h.b16 %v69
    %v275 = vunpack.c.l.b16 %v70
    %v276 = vunpack.c.l.b16 %v72
    %v277 = vunpack.c.h.b16 %v72
    %v278 = vunpack.c.l.b16 %v73
    %v279 = vunpack.c.l.b16 %v75
    %v280 = vunpack.c.h.b16 %v75
    %v281 = vunpack.c.l.b16 %v76
    %v282 = vunpack.c.l.b16 %v78
    %v283 = vunpack.c.h.b16 %v78
    %v284 = vunpack.c.l.b16 %v79
    %v285 = vunpack.c.l.b16 %v81
    %v286 = vunpack.c.h.b16 %v81
    %v287 = vunpack.c.l.b16 %v82
    %v288 = vunpack.c.l.b16 %v84
    %v289 = vunpack.c.h.b16 %v84
    %v290 = vunpack.c.l.b16 %v85
    %v291 = vunpack.c.l.b16 %v87
    %v292 = vunpack.c.h.b16 %v87
    %v293 = vunpack.c.l.b16 %v88
    %v294 = vunpack.c.l.b16 %v90
    %v295 = vunpack.c.h.b16 %v90
    %v296 = vunpack.c.l.b16 %v91
    %v297 = vunpack.c.l.b16 %v93
    %v298 = vunpack.c.h.b16 %v93
    %v299 = vunpack.c.l.b16 %v94
    %v300 = vunpack.c.l.b16 %v96
    %v301 = vunpack.c.h.b16 %v96
    %v302 = vunpack.c.l.b16 %v97
    %v303 = vunpack.c.l.b16 %v99
    %v304 = vunpack.c.h.b16 %v99
    %v305 = vunpack.c.l.b16 %v100
    %v306 = vunpack.c.l.b16 %v102
    %v307 = vunpack.c.h.b16 %v102
    %v308 = vunpack.c.l.b16 %v103
    %v309 = vpack.c.b16 %v264, %v261
    %v310 = vpack.c.b16 %v265, %v262
    %v311 = vpack.c.b16 %v266, %v263
    %v312 = vpack.c.b16 %v270, %v267
    %v313 = vpack.c.b16 %v271, %v268
    %v314 = vpack.c.b16 %v272, %v269
    %v315 = vpack.c.b16 %v276, %v273
    %v316 = vpack.c.b16 %v277, %v274
    %v317 = vpack.c.b16 %v278, %v275
    %v318 = vpack.c.b16 %v282, %v279
    %v319 = vpack.c.b16 %v283, %v280
    %v320 = vpack.c.b16 %v284, %v281
    %v321 = vpack.c.b16 %v288, %v285
    %v322 = vpack.c.b16 %v289, %v286
    %v323 = vpack.c.b16 %v290, %v287
    %v324 = vpack.c.b16 %v294, %v291
    %v325 = vpack.c.b16 %v295, %v292
    %v326 = vpack.c.b16 %v296, %v293
    %v327 = vpack.c.b16 %v300, %v297
    %v328 = vpack.c.b16 %v301, %v298
    %v329 = vpack.c.b16 %v302, %v299
    %v330 = vpack.c.b16 %v306, %v303
    %v331 = vpack.c.b16 %v307, %v304
    %v332 = vpack.c.b16 %v308, %v305
    %357 = vmatprep.subr.bf16.mxu0 %v310
    %358 = vmatpush1.bf16.msra.mxu0 %v309
    %359 = vmatprep.subr.bf16.mxu0 %v313
    %360 = vmatpush1.bf16.msra.mxu0 %v312
    %361 = vmatprep.subr.bf16.mxu0 %v316
    %362 = vmatpush1.bf16.msra.mxu0 %v315
    %363 = vmatprep.subr.bf16.mxu0 %v319
    %364 = vmatpush1.bf16.msra.mxu0 %v318
    %365 = vmatprep.subr.bf16.mxu0 %v322
    %366 = vmatpush1.bf16.msra.mxu0 %v321
    %367 = vmatprep.subr.bf16.mxu0 %v325
    %368 = vmatpush1.bf16.msra.mxu0 %v324
    %369 = vmatprep.subr.bf16.mxu0 %v328
    %370 = vmatpush1.bf16.msra.mxu0 %v327
    %371 = vmatprep.subr.bf16.mxu0 %v331
    %372 = vmatpush1.bf16.msra.mxu0 %v330
    %373 = vmatprep.subr.bf16.mxu0 0
    %374 = vmatpush1.bf16.msra.mxu0 0
    %375 = vmatprep.subr.bf16.mxu0 0
    %376 = vmatpush1.bf16.msra.mxu0 0
    %377 = vmatprep.subr.bf16.mxu0 0
    %378 = vmatpush1.bf16.msra.mxu0 0
    %379 = vmatprep.subr.bf16.mxu0 0
    %380 = vmatpush1.bf16.msra.mxu0 0
    %381 = vmatprep.subr.bf16.mxu0 0
    %382 = vmatpush1.bf16.msra.mxu0 0
    %383 = vmatprep.subr.bf16.mxu0 0
    %384 = vmatpush1.bf16.msra.mxu0 0
    %385 = vmatprep.subr.bf16.mxu0 0
    %386 = vmatpush1.bf16.msra.mxu0 0
    %387 = vmatprep.subr.bf16.mxu0 0
    %388 = vmatpush1.bf16.msra.mxu0 0
    %389 = vmatprep.mubr.bf16.mxu0 0
    %390 = vmatmul.mubr.bf16.gmra.mrb[0].mxu0 %v228
    %v391 = vpop.f32.mrb[0].mxu0
    %v392 = vadd.f32 0.0, %v391
    %v393 = vpop.f32.mrb[0].mxu0
    %v394 = vadd.f32 0.0, %v393
    %v395 = vpop.f32.mrb[0].mxu0
    %v396 = vadd.f32 0.0, %v395
    %v397 = vpop.f32.mrb[0].mxu0
    %v398 = vadd.f32 0.0, %v397
    %399 = vdwg.mxu0
    %400 = vmatprep.subr.bf16.mxu0 0
    %401 = vmatpush1.bf16.msra.mxu0 %v311
    %402 = vmatprep.subr.bf16.mxu0 0
    %403 = vmatpush1.bf16.msra.mxu0 %v314
    %404 = vmatprep.subr.bf16.mxu0 0
    %405 = vmatpush1.bf16.msra.mxu0 %v317
    %406 = vmatprep.subr.bf16.mxu0 0
    %407 = vmatpush1.bf16.msra.mxu0 %v320
    %408 = vmatprep.subr.bf16.mxu0 0
    %409 = vmatpush1.bf16.msra.mxu0 %v323
    %410 = vmatprep.subr.bf16.mxu0 0
    %411 = vmatpush1.bf16.msra.mxu0 %v326
    %412 = vmatprep.subr.bf16.mxu0 0
    %413 = vmatpush1.bf16.msra.mxu0 %v329
    %414 = vmatprep.subr.bf16.mxu0 0
    %415 = vmatpush1.bf16.msra.mxu0 %v332
    %416 = vmatprep.subr.bf16.mxu0 0
    %417 = vmatpush1.bf16.msra.mxu0 0
    %418 = vmatprep.subr.bf16.mxu0 0
    %419 = vmatpush1.bf16.msra.mxu0 0
    %420 = vmatprep.subr.bf16.mxu0 0
    %421 = vmatpush1.bf16.msra.mxu0 0
    %422 = vmatprep.subr.bf16.mxu0 0
    %423 = vmatpush1.bf16.msra.mxu0 0
    %424 = vmatprep.subr.bf16.mxu0 0
    %425 = vmatpush1.bf16.msra.mxu0 0
    %426 = vmatprep.subr.bf16.mxu0 0
    %427 = vmatpush1.bf16.msra.mxu0 0
    %428 = vmatprep.subr.bf16.mxu0 0
    %429 = vmatpush1.bf16.msra.mxu0 0
    %430 = vmatprep.subr.bf16.mxu0 0
    %431 = vmatpush1.bf16.msra.mxu0 0
    %432 = vmatprep.mubr.bf16.mxu0 0
    %433 = vmatmul.mubr.bf16.gmra.mrb[0].mxu0 %v228
    %v434 = vpop.f32.mrb[0].mxu0
    %v435 = vadd.f32 0.0, %v434
    %v436 = vpop.f32.mrb[0].mxu0
    %v437 = vpop.f32.mrb[0].mxu0
    %v438 = vadd.f32 0.0, %v437
    %v439 = vpop.f32.mrb[0].mxu0
    %440 = vdwg.mxu0
    %v441 = vpack.c.bf16 %v396, %v392
    %v442 = vpack.c.bf16 %v398, %v394
    %443 = vmatprep.subr.bf16.mxu0 0
    %444 = vmatpush1.bf16.xpose.msra.mxu0 %v442
    %445 = vmatprep.subr.bf16.mxu0 0
    %446 = vmatpush1.bf16.xpose.msra.mxu0 0
    %447 = vmatprep.subr.bf16.mxu0 0
    %448 = vmatpush1.bf16.xpose.msra.mxu0 0
    %449 = vmatprep.subr.bf16.mxu0 0
    %450 = vmatpush1.bf16.xpose.msra.mxu0 0
    %451 = vmatprep.subr.bf16.mxu0 0
    %452 = vmatpush1.bf16.xpose.msra.mxu0 0
    %453 = vmatprep.subr.bf16.mxu0 0
    %454 = vmatpush1.bf16.xpose.msra.mxu0 0
    %455 = vmatprep.subr.bf16.mxu0 0
    %456 = vmatpush1.bf16.xpose.msra.mxu0 0
    %457 = vmatprep.subr.bf16.mxu0 0
    %458 = vmatpush1.bf16.xpose.msra.mxu0 0
    %459 = vmatprep.subr.bf16.mxu0 0
    %460 = vmatpush1.bf16.xpose.msra.mxu0 0
    %461 = vmatprep.subr.bf16.mxu0 0
    %462 = vmatpush1.bf16.xpose.msra.mxu0 0
    %463 = vmatprep.subr.bf16.mxu0 0
    %464 = vmatpush1.bf16.xpose.msra.mxu0 0
    %465 = vmatprep.subr.bf16.mxu0 0
    %466 = vmatpush1.bf16.xpose.msra.mxu0 0
    %467 = vmatprep.subr.bf16.mxu0 0
    %468 = vmatpush1.bf16.xpose.msra.mxu0 0
    %469 = vmatprep.subr.bf16.mxu0 0
    %470 = vmatpush1.bf16.xpose.msra.mxu0 0
    %471 = vmatprep.subr.bf16.mxu0 0
    %472 = vmatpush1.bf16.xpose.msra.mxu0 0
    %473 = vmatprep.subr.bf16.mxu0 0
    %474 = vmatpush1.bf16.xpose.msra.mxu0 0
    %475 = vmatprep.mubr.bf16.mxu0 0
    %476 = vmatmul.mubr.bf16.gmra.mrb[0].mxu0 %v441
    %v477 = vpop.f32.mrb[0].mxu0
    %v478 = vadd.f32 0.0, %v477
    %v479 = vpop.f32.mrb[0].mxu0
    %v480 = vpop.f32.mrb[0].mxu0
    %v481 = vadd.f32 0.0, %v480
    %v482 = vpop.f32.mrb[0].mxu0
    %483 = vdwg.mxu0
    %v484 = vmul.f32 %v478, 0.17677669
    %v485 = vmul.f32 %v481, 0.17677669
    %v486 = vld [vmem:[%s5] sm:$0xff]
    %v487 = vld [vmem:[%s5 + $0x8] sm:$0xff]
    %vm488 = vcmp.gt.f32.partialorder %v486, 0.0
    %vm489 = vcmp.gt.f32.partialorder %v487, 0.0
    %vm490 = vcmp.gt.f32.partialorder %v56, 0.0
    %v491 = vsel %vm490, 1, 0
    %v492 = vlaneseq
    %v493 = vshrl.u32 %v492, 7
    %v494 = vsub.s32 0, %v493
    %v495 = vrot.slane %v491, %v494
    %vm496 = vcmp.eq.s32.totalorder %v495, 1
    %vm497 = vmand %vm488, %vm496
    %vm498 = vmand %vm489, %vm496
    %v499 = vsel %vm497, %v484, -1e+09
    %v500 = vsel %vm498, %v485, -1e+09
    %vm501 = vcmask 130048
    %v502 = vsel %vm501, %v499, -inf
    %503 = vmax.xlane.f32.xlu0 %v502
    %v504 = vpop.xlane.xlu0 %503
    %v505 = vsel %vm501, %v500, -inf
    %506 = vmax.xlane.f32.xlu0 %v505
    %v507 = vpop.xlane.xlu0 %506
    %v508 = vsub.f32 %v499, %v504
    %v509 = vsub.f32 %v500, %v507
    %v510 = vmul.f32 %v508, 1.442695
    %v511 = vpow.pop %v510
    %v512 = vmul.f32 %v509, 1.442695
    %v513 = vpow.pop %v512
    %v514 = vsel %vm501, %v511, 0.0
    %515 = vadd.xlane.f32.xlu0 %v514
    %v516 = vpop.xlane.xlu0 %515
    %v517 = vsel %vm501, %v513, 0.0
    %518 = vadd.xlane.f32.xlu0 %v517
    %v519 = vpop.xlane.xlu0 %518
    %v520 = vrcp.pop %v516
    %v521 = vrcp.pop %v519
    %v522 = vmul.f32 %v511, %v520
    %v523 = vmul.f32 %v513, %v521
    %v524 = vpack.c.bf16 %v523, %v522
    %v525 = vpack.c.bf16 %v438, %v435
    %v527 = vsel %vm501, %v524, 0
    %529 = vmatprep.subr.bf16.mxu0 0
    %530 = vmatpush1.bf16.msra.mxu0 %v525
    %531 = vmatprep.subr.bf16.mxu0 0
    %532 = vmatpush1.bf16.msra.mxu0 0
    %533 = vmatprep.subr.bf16.mxu0 0
    %534 = vmatpush1.bf16.msra.mxu0 0
    %535 = vmatprep.subr.bf16.mxu0 0
    %536 = vmatpush1.bf16.msra.mxu0 0
    %537 = vmatprep.subr.bf16.mxu0 0
    %538 = vmatpush1.bf16.msra.mxu0 0
    %539 = vmatprep.subr.bf16.mxu0 0
    %540 = vmatpush1.bf16.msra.mxu0 0
    %541 = vmatprep.subr.bf16.mxu0 0
    %542 = vmatpush1.bf16.msra.mxu0 0
    %543 = vmatprep.subr.bf16.mxu0 0
    %544 = vmatpush1.bf16.msra.mxu0 0
    %545 = vmatprep.subr.bf16.mxu0 0
    %546 = vmatpush1.bf16.msra.mxu0 0
    %547 = vmatprep.subr.bf16.mxu0 0
    %548 = vmatpush1.bf16.msra.mxu0 0
    %549 = vmatprep.subr.bf16.mxu0 0
    %550 = vmatpush1.bf16.msra.mxu0 0
    %551 = vmatprep.subr.bf16.mxu0 0
    %552 = vmatpush1.bf16.msra.mxu0 0
    %553 = vmatprep.subr.bf16.mxu0 0
    %554 = vmatpush1.bf16.msra.mxu0 0
    %555 = vmatprep.subr.bf16.mxu0 0
    %556 = vmatpush1.bf16.msra.mxu0 0
    %557 = vmatprep.subr.bf16.mxu0 0
    %558 = vmatpush1.bf16.msra.mxu0 0
    %559 = vmatprep.subr.bf16.mxu0 0
    %560 = vmatpush1.bf16.msra.mxu0 0
    %561 = vmatprep.mubr.bf16.mxu0 0
    %562 = vmatmul.mubr.bf16.gmra.mrb[0].mxu0 %v527
    %v563 = vpop.f32.mrb[0].mxu0
    %v564 = vadd.f32 0.0, %v563
    %v565 = vpop.f32.mrb[0].mxu0
    %v566 = vpop.f32.mrb[0].mxu0
    %v567 = vadd.f32 0.0, %v566
    %v568 = vpop.f32.mrb[0].mxu0
    %569 = vdwg.mxu0
    %v570 = vpack.c.bf16 %v567, %v564
    %v571 = vunpack.c.h.b16 %v58
    %v572 = vunpack.c.h.b16 %v61
    %v573 = vunpack.c.h.b16 %v64
    %v574 = vunpack.c.h.b16 %v67
    %v575 = vunpack.c.h.b16 %v70
    %v576 = vunpack.c.h.b16 %v73
    %v577 = vunpack.c.h.b16 %v76
    %v578 = vunpack.c.h.b16 %v79
    %v579 = vunpack.c.h.b16 %v82
    %v580 = vunpack.c.h.b16 %v85
    %v581 = vunpack.c.h.b16 %v88
    %v582 = vunpack.c.h.b16 %v91
    %v583 = vunpack.c.h.b16 %v94
    %v584 = vunpack.c.h.b16 %v97
    %v585 = vunpack.c.h.b16 %v100
    %v586 = vunpack.c.h.b16 %v103
    %v587 = vpack.c.b16 %v572, %v571
    %v588 = vpack.c.b16 %v574, %v573
    %v589 = vpack.c.b16 %v576, %v575
    %v590 = vpack.c.b16 %v578, %v577
    %v591 = vpack.c.b16 %v580, %v579
    %v592 = vpack.c.b16 %v582, %v581
    %v593 = vpack.c.b16 %v584, %v583
    %v594 = vpack.c.b16 %v586, %v585
    %603 = vmatprep.subr.bf16.mxu0 0
    %604 = vmatpush1.bf16.msra.mxu0 %v587
    %605 = vmatprep.subr.bf16.mxu0 0
    %606 = vmatpush1.bf16.msra.mxu0 %v588
    %607 = vmatprep.subr.bf16.mxu0 0
    %608 = vmatpush1.bf16.msra.mxu0 %v589
    %609 = vmatprep.subr.bf16.mxu0 0
    %610 = vmatpush1.bf16.msra.mxu0 %v590
    %611 = vmatprep.subr.bf16.mxu0 0
    %612 = vmatpush1.bf16.msra.mxu0 %v591
    %613 = vmatprep.subr.bf16.mxu0 0
    %614 = vmatpush1.bf16.msra.mxu0 %v592
    %615 = vmatprep.subr.bf16.mxu0 0
    %616 = vmatpush1.bf16.msra.mxu0 %v593
    %617 = vmatprep.subr.bf16.mxu0 0
    %618 = vmatpush1.bf16.msra.mxu0 %v594
    %619 = vmatprep.subr.bf16.mxu0 0
    %620 = vmatpush1.bf16.msra.mxu0 0
    %621 = vmatprep.subr.bf16.mxu0 0
    %622 = vmatpush1.bf16.msra.mxu0 0
    %623 = vmatprep.subr.bf16.mxu0 0
    %624 = vmatpush1.bf16.msra.mxu0 0
    %625 = vmatprep.subr.bf16.mxu0 0
    %626 = vmatpush1.bf16.msra.mxu0 0
    %627 = vmatprep.subr.bf16.mxu0 0
    %628 = vmatpush1.bf16.msra.mxu0 0
    %629 = vmatprep.subr.bf16.mxu0 0
    %630 = vmatpush1.bf16.msra.mxu0 0
    %631 = vmatprep.subr.bf16.mxu0 0
    %632 = vmatpush1.bf16.msra.mxu0 0
    %633 = vmatprep.subr.bf16.mxu0 0
    %634 = vmatpush1.bf16.msra.mxu0 0
    %635 = vmatprep.mubr.bf16.mxu0 0
    %636 = vmatmul.mubr.bf16.gmra.mrb[0].mxu0 %v570
    %v637 = vpop.f32.mrb[0].mxu0
    %v638 = vadd.f32 0.0, %v637
    %v639 = vpop.f32.mrb[0].mxu0
    %v640 = vpop.f32.mrb[0].mxu0
    %v641 = vadd.f32 0.0, %v640
    %v642 = vpop.f32.mrb[0].mxu0
    %643 = vdwg.mxu0
    %vm644 = vcmp.lt.s32.totalorder %v107, 32
    %v645 = vsel %vm644, 1, 0
    %v646 = vcvt.s32.f32 %v645
    %v647 = vadd.f32 %v222, %v638
    %v648 = vadd.f32 %v225, %v641
    %v649 = vmul.f32 %v647, %v646
    %v650 = vmul.f32 %v648, %v646
    %651 = vadd.xlane.f32.xlu0 %v649
    %v652 = vpop.xlane.xlu0 %651
    %653 = vadd.xlane.f32.xlu0 %v650
    %v654 = vpop.xlane.xlu0 %653
    %v655 = vmul.f32 %v652, 0.03125
    %v656 = vmul.f32 %v654, 0.03125
    %v657 = vsub.f32 %v647, %v655
    %v658 = vsub.f32 %v648, %v656
    %v659 = vmul.f32 %v657, %v646
    %v660 = vmul.f32 %v658, %v646
    %v661 = vmul.f32 %v659, %v659
    %v662 = vmul.f32 %v660, %v660
    %663 = vadd.xlane.f32.xlu0 %v661
    %v664 = vpop.xlane.xlu0 %663
    %665 = vadd.xlane.f32.xlu0 %v662
    %v666 = vpop.xlane.xlu0 %665
    %v667 = vmul.f32 %v664, 0.03125
    %v668 = vmul.f32 %v666, 0.03125
    %v669 = vadd.f32 %v667, 1e-12
    %v670 = vadd.f32 %v668, 1e-12
    %v671 = vrsqrt.pop %v669
    %v672 = vrsqrt.pop %v670
    %v673 = vmul.f32 %v659, %v671
    %v674 = vmul.f32 %v660, %v672
    %v675 = vlaneseq
    %v676 = vshrl.u32 %v675, 7
    %v677 = vsub.s32 0, %v676
    %v678 = vrot.slane %v105, %v677
    %v679 = vmul.f32 %v673, %v678
    %v680 = vmul.f32 %v674, %v678
    %v681 = vlaneseq
    %v682 = vshrl.u32 %v681, 7
    %v683 = vsub.s32 1, %v682
    %v684 = vrot.slane %v105, %v683
    %v685 = vadd.f32 %v679, %v684
    %v686 = vadd.f32 %v680, %v684
    %v687 = vpack.c.bf16 %v686, %v685
    %v704 = vunpack.c.l.b16 %v59
    %v705 = vunpack.c.l.b16 %v62
    %v706 = vunpack.c.l.b16 %v65
    %v707 = vunpack.c.l.b16 %v68
    %v708 = vunpack.c.l.b16 %v71
    %v709 = vunpack.c.l.b16 %v74
    %v710 = vunpack.c.l.b16 %v77
    %v711 = vunpack.c.l.b16 %v80
    %v712 = vunpack.c.l.b16 %v83
    %v713 = vunpack.c.l.b16 %v86
    %v714 = vunpack.c.l.b16 %v89
    %v715 = vunpack.c.l.b16 %v92
    %v716 = vunpack.c.l.b16 %v95
    %v717 = vunpack.c.l.b16 %v98
    %v718 = vunpack.c.l.b16 %v101
    %v719 = vunpack.c.l.b16 %v104
    %v720 = vpack.c.b16 %v705, %v704
    %v721 = vpack.c.b16 %v707, %v706
    %v722 = vpack.c.b16 %v709, %v708
    %v723 = vpack.c.b16 %v711, %v710
    %v724 = vpack.c.b16 %v713, %v712
    %v725 = vpack.c.b16 %v715, %v714
    %v726 = vpack.c.b16 %v717, %v716
    %v727 = vpack.c.b16 %v719, %v718
    %736 = vmatprep.subr.bf16.mxu0 0
    %737 = vmatpush1.bf16.msra.mxu0 %v720
    %738 = vmatprep.subr.bf16.mxu0 0
    %739 = vmatpush1.bf16.msra.mxu0 %v721
    %740 = vmatprep.subr.bf16.mxu0 0
    %741 = vmatpush1.bf16.msra.mxu0 %v722
    %742 = vmatprep.subr.bf16.mxu0 0
    %743 = vmatpush1.bf16.msra.mxu0 %v723
    %744 = vmatprep.subr.bf16.mxu0 0
    %745 = vmatpush1.bf16.msra.mxu0 %v724
    %746 = vmatprep.subr.bf16.mxu0 0
    %747 = vmatpush1.bf16.msra.mxu0 %v725
    %748 = vmatprep.subr.bf16.mxu0 0
    %749 = vmatpush1.bf16.msra.mxu0 %v726
    %750 = vmatprep.subr.bf16.mxu0 0
    %751 = vmatpush1.bf16.msra.mxu0 %v727
    %752 = vmatprep.subr.bf16.mxu0 0
    %753 = vmatpush1.bf16.msra.mxu0 0
    %754 = vmatprep.subr.bf16.mxu0 0
    %755 = vmatpush1.bf16.msra.mxu0 0
    %756 = vmatprep.subr.bf16.mxu0 0
    %757 = vmatpush1.bf16.msra.mxu0 0
    %758 = vmatprep.subr.bf16.mxu0 0
    %759 = vmatpush1.bf16.msra.mxu0 0
    %760 = vmatprep.subr.bf16.mxu0 0
    %761 = vmatpush1.bf16.msra.mxu0 0
    %762 = vmatprep.subr.bf16.mxu0 0
    %763 = vmatpush1.bf16.msra.mxu0 0
    %764 = vmatprep.subr.bf16.mxu0 0
    %765 = vmatpush1.bf16.msra.mxu0 0
    %766 = vmatprep.subr.bf16.mxu0 0
    %767 = vmatpush1.bf16.msra.mxu0 0
    %768 = vmatprep.mubr.bf16.mxu0 0
    %769 = vmatmul.mubr.bf16.gmra.mrb[0].mxu0 %v687
    %v770 = vpop.f32.mrb[0].mxu0
    %v771 = vadd.f32 0.0, %v770
    %v772 = vpop.f32.mrb[0].mxu0
    %v773 = vpop.f32.mrb[0].mxu0
    %v774 = vadd.f32 0.0, %v773
    %v775 = vpop.f32.mrb[0].mxu0
    %776 = vdwg.mxu0
    %v777 = vmul.f32 %v771, %v771
    %v778 = vmul.f32 %v774, %v774
    %v779 = vmul.f32 %v771, %v777
    %v780 = vmul.f32 %v774, %v778
    %v781 = vmul.f32 %v779, 0.044715
    %v782 = vmul.f32 %v780, 0.044715
    %v783 = vadd.f32 %v771, %v781
    %v784 = vadd.f32 %v774, %v782
    %v785 = vmul.f32 %v783, 0.7978846
    %v786 = vmul.f32 %v784, 0.7978846
    %v787 = vtanh.pop %v785
    %v788 = vtanh.pop %v786
    %v789 = vadd.f32 %v787, 1.0
    %v790 = vadd.f32 %v788, 1.0
    %v791 = vmul.f32 %v789, 0.5
    %v792 = vmul.f32 %v790, 0.5
    %v793 = vmul.f32 %v771, %v791
    %v794 = vmul.f32 %v774, %v792
    %v795 = vpack.c.bf16 %v794, %v793
    %v796 = vunpack.c.h.b16 %v59
    %v797 = vunpack.c.h.b16 %v62
    %v798 = vunpack.c.h.b16 %v65
    %v799 = vunpack.c.h.b16 %v68
    %v800 = vunpack.c.h.b16 %v71
    %v801 = vunpack.c.h.b16 %v74
    %v802 = vunpack.c.h.b16 %v77
    %v803 = vunpack.c.h.b16 %v80
    %v804 = vunpack.c.h.b16 %v83
    %v805 = vunpack.c.h.b16 %v86
    %v806 = vunpack.c.h.b16 %v89
    %v807 = vunpack.c.h.b16 %v92
    %v808 = vunpack.c.h.b16 %v95
    %v809 = vunpack.c.h.b16 %v98
    %v810 = vunpack.c.h.b16 %v101
    %v811 = vunpack.c.h.b16 %v104
    %v812 = vpack.c.b16 %v797, %v796
    %v813 = vpack.c.b16 %v799, %v798
    %v814 = vpack.c.b16 %v801, %v800
    %v815 = vpack.c.b16 %v803, %v802
    %v816 = vpack.c.b16 %v805, %v804
    %v817 = vpack.c.b16 %v807, %v806
    %v818 = vpack.c.b16 %v809, %v808
    %v819 = vpack.c.b16 %v811, %v810
    %828 = vmatprep.subr.bf16.mxu0 0
    %829 = vmatpush1.bf16.msra.mxu0 %v812
    %830 = vmatprep.subr.bf16.mxu0 0
    %831 = vmatpush1.bf16.msra.mxu0 %v813
    %832 = vmatprep.subr.bf16.mxu0 0
    %833 = vmatpush1.bf16.msra.mxu0 %v814
    %834 = vmatprep.subr.bf16.mxu0 0
    %835 = vmatpush1.bf16.msra.mxu0 %v815
    %836 = vmatprep.subr.bf16.mxu0 0
    %837 = vmatpush1.bf16.msra.mxu0 %v816
    %838 = vmatprep.subr.bf16.mxu0 0
    %839 = vmatpush1.bf16.msra.mxu0 %v817
    %840 = vmatprep.subr.bf16.mxu0 0
    %841 = vmatpush1.bf16.msra.mxu0 %v818
    %842 = vmatprep.subr.bf16.mxu0 0
    %843 = vmatpush1.bf16.msra.mxu0 %v819
    %844 = vmatprep.subr.bf16.mxu0 0
    %845 = vmatpush1.bf16.msra.mxu0 0
    %846 = vmatprep.subr.bf16.mxu0 0
    %847 = vmatpush1.bf16.msra.mxu0 0
    %848 = vmatprep.subr.bf16.mxu0 0
    %849 = vmatpush1.bf16.msra.mxu0 0
    %850 = vmatprep.subr.bf16.mxu0 0
    %851 = vmatpush1.bf16.msra.mxu0 0
    %852 = vmatprep.subr.bf16.mxu0 0
    %853 = vmatpush1.bf16.msra.mxu0 0
    %854 = vmatprep.subr.bf16.mxu0 0
    %855 = vmatpush1.bf16.msra.mxu0 0
    %856 = vmatprep.subr.bf16.mxu0 0
    %857 = vmatpush1.bf16.msra.mxu0 0
    %858 = vmatprep.subr.bf16.mxu0 0
    %859 = vmatpush1.bf16.msra.mxu0 0
    %860 = vmatprep.mubr.bf16.mxu0 0
    %861 = vmatmul.mubr.bf16.gmra.mrb[0].mxu0 %v795
    %v862 = vpop.f32.mrb[0].mxu0
    %v863 = vadd.f32 0.0, %v862
    %v864 = vpop.f32.mrb[0].mxu0
    %v865 = vpop.f32.mrb[0].mxu0
    %v866 = vadd.f32 0.0, %v865
    %v867 = vpop.f32.mrb[0].mxu0
    %868 = vdwg.mxu0
    %v869 = vadd.f32 %v685, %v863
    %v870 = vadd.f32 %v686, %v866
    %v871 = vmul.f32 %v869, %v646
    %v872 = vmul.f32 %v870, %v646
    %873 = vadd.xlane.f32.xlu0 %v871
    %v874 = vpop.xlane.xlu0 %873
    %875 = vadd.xlane.f32.xlu0 %v872
    %v876 = vpop.xlane.xlu0 %875
    %v877 = vmul.f32 %v874, 0.03125
    %v878 = vmul.f32 %v876, 0.03125
    %v879 = vsub.f32 %v869, %v877
    %v880 = vsub.f32 %v870, %v878
    %v881 = vmul.f32 %v879, %v646
    %v882 = vmul.f32 %v880, %v646
    %v883 = vmul.f32 %v881, %v881
    %v884 = vmul.f32 %v882, %v882
    %885 = vadd.xlane.f32.xlu0 %v883
    %v886 = vpop.xlane.xlu0 %885
    %887 = vadd.xlane.f32.xlu0 %v884
    %v888 = vpop.xlane.xlu0 %887
    %v889 = vmul.f32 %v886, 0.03125
    %v890 = vmul.f32 %v888, 0.03125
    %v891 = vadd.f32 %v889, 1e-12
    %v892 = vadd.f32 %v890, 1e-12
    %v893 = vrsqrt.pop %v891
    %v894 = vrsqrt.pop %v892
    %v895 = vmul.f32 %v881, %v893
    %v896 = vmul.f32 %v882, %v894
    %v897 = vlaneseq
    %v898 = vshrl.u32 %v897, 7
    %v899 = vsub.s32 2, %v898
    %v900 = vrot.slane %v105, %v899
    %v901 = vmul.f32 %v895, %v900
    %v902 = vmul.f32 %v896, %v900
    %v903 = vlaneseq
    %v904 = vshrl.u32 %v903, 7
    %v905 = vsub.s32 3, %v904
    %v906 = vrot.slane %v105, %v905
    %v907 = vadd.f32 %v901, %v906
    %v908 = vadd.f32 %v902, %v906
    %v909 = vld [vmem:[%s6] sm:$0x3]
    %v911 = vlaneseq
    %v912 = vshrl.u32 %v911, 7
    %v913 = vsub.s32 0, %v912
    %v914 = vrot.slane %v56, %v913
    %v916 = vmul.f32 %v909, %v914
    %v918 = vsel %vm501, %v916, 0
    %920 = vmatprep.subr.mxu0 0.0
    %921 = vmatpush1.msra.mxu0 %v907
    %922 = vmatprep.subr.mxu0 0.0
    %923 = vmatpush1.msra.mxu0 %v908
    %924 = vmatprep.subr.mxu0 0.0
    %925 = vmatpush1.msra.mxu0 0.0
    %926 = vmatprep.subr.mxu0 0.0
    %927 = vmatpush1.msra.mxu0 0.0
    %928 = vmatprep.subr.mxu0 0.0
    %929 = vmatpush1.msra.mxu0 0.0
    %930 = vmatprep.subr.mxu0 0.0
    %931 = vmatpush1.msra.mxu0 0.0
    %932 = vmatprep.subr.mxu0 0.0
    %933 = vmatpush1.msra.mxu0 0.0
    %934 = vmatprep.subr.mxu0 0.0
    %935 = vmatpush1.msra.mxu0 0.0
    %936 = vmatprep.subr.mxu0 0.0
    %937 = vmatpush1.msra.mxu0 0.0
    %938 = vmatprep.subr.mxu0 0.0
    %939 = vmatpush1.msra.mxu0 0.0
    %940 = vmatprep.subr.mxu0 0.0
    %941 = vmatpush1.msra.mxu0 0.0
    %942 = vmatprep.subr.mxu0 0.0
    %943 = vmatpush1.msra.mxu0 0.0
    %944 = vmatprep.subr.mxu0 0.0
    %945 = vmatpush1.msra.mxu0 0.0
    %946 = vmatprep.subr.mxu0 0.0
    %947 = vmatpush1.msra.mxu0 0.0
    %948 = vmatprep.subr.mxu0 0.0
    %949 = vmatpush1.msra.mxu0 0.0
    %950 = vmatprep.subr.mxu0 0.0
    %951 = vmatpush1.msra.mxu0 0.0
    %952 = vmatprep.subr.mxu0 0.0
    %953 = vmatpush1.msra.mxu0 0.0
    %954 = vmatprep.subr.mxu0 0.0
    %955 = vmatpush1.msra.mxu0 0.0
    %956 = vmatprep.subr.mxu0 0.0
    %957 = vmatpush1.msra.mxu0 0.0
    %958 = vmatprep.subr.mxu0 0.0
    %959 = vmatpush1.msra.mxu0 0.0
    %960 = vmatprep.subr.mxu0 0.0
    %961 = vmatpush1.msra.mxu0 0.0
    %962 = vmatprep.subr.mxu0 0.0
    %963 = vmatpush1.msra.mxu0 0.0
    %964 = vmatprep.subr.mxu0 0.0
    %965 = vmatpush1.msra.mxu0 0.0
    %966 = vmatprep.subr.mxu0 0.0
    %967 = vmatpush1.msra.mxu0 0.0
    %968 = vmatprep.subr.mxu0 0.0
    %969 = vmatpush1.msra.mxu0 0.0
    %970 = vmatprep.subr.mxu0 0.0
    %971 = vmatpush1.msra.mxu0 0.0
    %972 = vmatprep.subr.mxu0 0.0
    %973 = vmatpush1.msra.mxu0 0.0
    %974 = vmatprep.subr.mxu0 0.0
    %975 = vmatpush1.msra.mxu0 0.0
    %976 = vmatprep.subr.mxu0 0.0
    %977 = vmatpush1.msra.mxu0 0.0
    %978 = vmatprep.subr.mxu0 0.0
    %979 = vmatpush1.msra.mxu0 0.0
    %980 = vmatprep.subr.mxu0 0.0
    %981 = vmatpush1.msra.mxu0 0.0
    %982 = vmatprep.subr.mxu0 0.0
    %983 = vmatpush1.msra.mxu0 0.0
    %984 = vmatprep.mubr.f32.mxu0 0.0
    %985 = vmatmul.mubr.f32.gmra.mrb[0].mxu0 %v918
    %v986 = vpop.f32.mrb[0].mxu0
    %v987 = vadd.f32 0.0, %v986
    %v988 = vpop.f32.mrb[0].mxu0
    %989 = vdwg.mxu0
    %vm990 = vcmask 123904
    %v991 = vsel %vm990, %v916, 0.0
    %992 = vadd.xlane.f32.xlu0 %v991
    %v993 = vpop.xlane.xlu0 %992
    %v994 = vmax.f32 %v993, 1e-09
    %v995 = vrcp.pop %v994
    %v996 = vmul.f32 %v987, %v995
    %v997 = vmul.f32 %v996, %v996
    %vm998 = vcmask 1041408
    %v999 = vsel %vm998, %v997, 0.0
    %1000 = vadd.xlane.f32.xlu0 %v999
    %v1001 = vpop.xlane.xlu0 %1000
    %v1002 = vmax.f32 %v1001, 1e-24
    %v1003 = vrsqrt.pop %v1002
    %v1004 = vmul.f32 %v996, %v1003
    %1005 = vst [vmem:[#allocation7] sm:$0x3] %v1004
    // Predicated region
    $region38: #{sentence_embedding_forward.1} parent=1 // pred_check
      _
    $region39: #{sentence_embedding_forward.1} parent=1 // pred_check_branch
      %1007 = sbr.rel (0) target = $region41
    $region40: #{sentence_embedding_forward.1} parent=1 // pred_region
      %s1009 = ssub.s32 32, 32
      %1010 = vsyncadd [#allocation4], %s1009
      %s1012 = sshll.u32 [#allocation7], 4
      %s1013 = int_to_ptr.vmem [resolvable:$true] %s1012
      %1015 = dma.vmem_to_hbm [thread:$0]  %s1013, 32, %s7, [#allocation4]
    $region41: #{sentence_embedding_forward.1} parent=1 // pred_fallthru
      _
    // Predicated region
    $region42: #{sentence_embedding_forward.1} parent=1 // pred_check
      _
    $region43: #{sentence_embedding_forward.1} parent=1 // pred_check_branch
      %1017 = sbr.rel (0) target = $region45
    $region44: #{sentence_embedding_forward.1} parent=1 // pred_region
      %1018 = dma.done [#allocation4], 32
    $region45: #{sentence_embedding_forward.1} parent=1 // pred_fallthru
      _
    %1019 = vsyncpa [#allocation3], 1
    %1020 = vsyncpa [#allocation6], 1
    %1021 = vsyncpa [#allocation4], 1

</llo_original>
